<compile_context>
chip_gen: v6e
topology: v6e:2x2x1
jax: 0.10.0
libtpu: 0.0.40
codegen_flags: <defaults>
</compile_context>

<pallas_src>
import jax
import jax.numpy as jnp
from jax.experimental import pallas as pl
from jax.experimental.pallas import tpu as pltpu

LANE = 128


def _round_up(n, m):
    return ((n + m - 1) // m) * m


_BUFFERED = getattr(pl, "Buffered", None)


def _spec(shape, index_map, buffer_count=None):
    """BlockSpec with optional explicit buffer depth (graceful fallback)."""
    if buffer_count is not None and _BUFFERED is not None:
        try:
            return pl.BlockSpec(shape, index_map,
                                pipeline_mode=_BUFFERED(buffer_count))
        except TypeError:
            pass
    return pl.BlockSpec(shape, index_map)


def _tpu_vmem_bytes():
    try:
        return int(pltpu.get_tpu_info().vmem_capacity_bytes)
    except Exception:
        return 64 << 20  # conservative default: v7x per-TensorCore VMEM


def mlp_kernel(x_ref, w1_ref, b1_ref, w2_ref, b2_ref, w3_ref, b3_ref,
               w4_ref, b4_ref, out_ref):
    # x[x == -1] = 0 : exact compare in f32 (bf16 rounding can never collapse
    # a nearby value onto -1.0), then cast the matmul operand to bf16.
    x = x_ref[...]
    x = jnp.where(x == -1.0, 0.0, x).astype(jnp.bfloat16)

    # Layer 1: Linear + ReLU (bf16 MXU operands, f32 accumulate, bf16 temp)
    h = jnp.dot(x, w1_ref[...], preferred_element_type=jnp.float32) + b1_ref[...]
    h = jnp.maximum(h, 0.0).astype(jnp.bfloat16)

    # Layer 2: Linear + ReLU
    h = jnp.dot(h, w2_ref[...], preferred_element_type=jnp.float32) + b2_ref[...]
    h = jnp.maximum(h, 0.0).astype(jnp.bfloat16)

    # Layer 3: Linear + Dropout (identity in eval mode)
    # TODO(synk): training-mode dropout (random mask + 1/(1-p) scale) not applied;
    # kernel reproduces eval-mode semantics deterministically.
    h = (jnp.dot(h, w3_ref[...], preferred_element_type=jnp.float32)
         + b3_ref[...]).astype(jnp.bfloat16)

    # Output layer (lane-padded to 128): forward returns pre-softmax `val`.
    out_ref[...] = (jnp.dot(h, w4_ref[...], preferred_element_type=jnp.float32)
                    + b4_ref[...])


def prepare_params(params):
    """One-time parameter preparation: bf16 weight cast + lane-dense padding
    of the output layer (128 lanes) so the kernel writeback is unmasked."""
    (w1, b1), (w2, b2), (w3, b3), (w4, b4) = params
    out_features = w4.shape[1]
    out_p = _round_up(out_features, LANE)
    w4p = jnp.zeros((w4.shape[0], out_p), w4.dtype).at[:, :out_features].set(w4)
    b4p = jnp.zeros((1, out_p), b4.dtype).at[:, :out_features].set(b4)
    weights = tuple(w.astype(jnp.bfloat16) for w in (w1, w2, w3, w4p))
    biases = (b1, b2, b3, b4p)  # biases stay f32
    return {"weights": weights, "biases": biases, "out_features": out_features}


def mlp_forward(x, prepared, tile_b=None):
    w1, w2, w3, w4 = prepared["weights"]     # bf16, w4 lane-padded
    b1, b2, b3, b4 = prepared["biases"]      # f32,  b4 lane-padded
    out_features = prepared["out_features"]

    B, in_features = x.shape
    h0, h1, h2 = w1.shape[1], w2.shape[1], w3.shape[1]
    out_p = w4.shape[1]

    x_buffers, w_buffers = 3, 1  # streamed-input depth / resident-weight depth

    # ---- VMEM budgeting & generation-dependent batch tile -------------------
    vmem = _tpu_vmem_bytes()
    # resident weights + biases (budget conservatively for 2 buffers)
    fixed = 2 * (sum(w.size for w in (w1, w2, w3, w4)) * 2
                 + sum(b.size for b in (b1, b2, b3, b4)) * 4)
    # per batch-row VMEM: streamed x (f32 x x_buffers), out (f32 x 2) plus a
    # generous 2x margin for the f32/bf16 intermediate working set.
    per_row = (in_features * 4 * x_buffers + out_p * 4 * 2
               + 2 * 4 * (in_features + h0 + h1 + h2 + out_p))
    if tile_b is None:
        budget = int(vmem * 0.75)
        tile_cap = 2048 if vmem >= (96 << 20) else 512   # v5e/v6e vs v7x
        avail = max(budget - fixed, per_row * 8)
        tile_b = min(tile_cap, max(8, (avail // per_row) // 8 * 8))
        tile_b = min(tile_b, _round_up(B, 8))
        if B >= 16:  # >=2 grid steps so "parallel" axis can use both v7x TCs
            tile_b = min(tile_b, _round_up(pl.cdiv(B, 2), 8))
    tile_b = max(8, _round_up(min(tile_b, _round_up(B, 8)), 8))
    # TODO(synk): if resident weights alone ever exceed the VMEM budget, add a
    # hidden-dim-tiled (K/N grid axis + f32 accumulator) fallback path.

    need = fixed + per_row * tile_b + (4 << 20)
    vmem_limit = int(min(int(vmem * 0.9), max(need, 16 << 20)))

    grid = (pl.cdiv(B, tile_b),)

    flops = 2 * B * (w1.size + w2.size + w3.size + w4.size)
    bytes_accessed = (B * in_features * 4
                      + sum(w.size for w in (w1, w2, w3, w4)) * 2
                      + sum(b.size for b in (b1, b2, b3, b4)) * 4
                      + B * out_p * 4)
    cost = pl.CostEstimate(flops=flops, transcendentals=0,
                           bytes_accessed=bytes_accessed)

    def call(use_explicit_buffering):
        xb = x_buffers if use_explicit_buffering else None
        wb = w_buffers if use_explicit_buffering else None

        def resident(arr):
            # Full-array block whose block index never changes -> stays in
            # VMEM across all grid steps (single DMA, single buffer).
            return _spec(arr.shape, lambda i: (0, 0), buffer_count=wb)

        return pl.pallas_call(
            mlp_kernel,
            out_shape=jax.ShapeDtypeStruct((B, out_p), jnp.float32),
            grid_spec=pltpu.PrefetchScalarGridSpec(
                num_scalar_prefetch=0,
                grid=grid,
                in_specs=[
                    _spec((tile_b, in_features), lambda i: (i, 0),
                          buffer_count=xb),
                    resident(w1), resident(b1),
                    resident(w2), resident(b2),
                    resident(w3), resident(b3),
                    resident(w4), resident(b4),
                ],
                out_specs=pl.BlockSpec((tile_b, out_p), lambda i: (i, 0)),
            ),
            compiler_params=pltpu.CompilerParams(
                dimension_semantics=("parallel",),
                vmem_limit_bytes=vmem_limit),
            cost_estimate=cost,
        )(x, w1, b1, w2, b2, w3, b3, w4, b4)

    try:
        out = call(True)
    except Exception:
        # pipeline_mode / Buffered not supported by this jax build -> defaults.
        out = call(False)

    # Kernel writes a lane-dense (B, 128) slab; slice the logical outputs.
    return out[:, :out_features]


def init_params(key, input_size, hidden_sizes, output_size):
    """Deterministic init mimicking nn.Linear's U(-1/sqrt(fan_in), 1/sqrt(fan_in))."""
    sizes = [input_size] + list(hidden_sizes) + [output_size]
    params = []
    for i in range(len(sizes) - 1):
        fan_in, fan_out = sizes[i], sizes[i + 1]
        key, kw, kb = jax.random.split(key, 3)
        bound = 1.0 / (fan_in ** 0.5)
        # stored as (in, out) so the kernel does x @ W
        w = jax.random.uniform(kw, (fan_in, fan_out), jnp.float32, -bound, bound)
        b = jax.random.uniform(kb, (1, fan_out), jnp.float32, -bound, bound)
        params.append((w, b))
    return params


def mlp_reference(x, params):
    """Pure-JAX reference with the same bf16-operand / f32-accumulate math."""
    x = jnp.where(x == -1.0, 0.0, x)
    (w1, b1), (w2, b2), (w3, b3), (w4, b4) = params

    def lin(h, w, b):
        return jnp.dot(h.astype(jnp.bfloat16), w.astype(jnp.bfloat16),
                       preferred_element_type=jnp.float32) + b

    h = jnp.maximum(lin(x, w1, b1), 0.0)
    h = jnp.maximum(lin(h, w2, b2), 0.0)
    h = lin(h, w3, b3)   # dropout = identity (eval)
    return lin(h, w4, b4)


if __name__ == "__main__":
    batch = 8
    input_size = 32
    hidden_sizes = [64, 48, 32]   # hidden_sizes[2] == 32 -> that layer gets Dropout
    output_size = 8
    dropout_ratio = 0.5           # unused at inference

    key = jax.random.PRNGKey(0)
    k_x, k_x2, k_p = jax.random.split(key, 3)

    params = init_params(k_p, input_size, hidden_sizes, output_size)
    prepared = prepare_params(params)   # one-time bf16 cast + lane padding

    x = jax.random.normal(k_x, (batch, input_size), jnp.float32)
    # Inject exact -1.0 entries to exercise the x[x == -1] = 0 masking.
    x = x.at[0, 0].set(-1.0).at[3, 5].set(-1.0).at[7, 31].set(-1.0)

    val = jax.block_until_ready(mlp_forward(x, prepared))
    ref = mlp_reference(x, params)
    assert val.shape == (batch, output_size)
    assert jnp.allclose(val, ref, atol=1e-2, rtol=1e-2), "mismatch vs reference"

    # Multi-step grid with a ragged last block (no wrapper-side padding of x).
    x2 = jax.random.normal(k_x2, (20, input_size), jnp.float32)
    x2 = x2.at[1, 2].set(-1.0)
    val2 = jax.block_until_ready(mlp_forward(x2, prepared, tile_b=8))
    ref2 = mlp_reference(x2, params)
    assert val2.shape == (20, output_size)
    assert jnp.allclose(val2, ref2, atol=1e-2, rtol=1e-2), "mismatch (ragged grid)"

    # Auto tile planning path (B >= 16 -> at least 2 grid steps).
    val3 = jax.block_until_ready(mlp_forward(x2, prepared))
    assert jnp.allclose(val3, ref2, atol=1e-2, rtol=1e-2), "mismatch (auto tile)"

    print("KERNEL_OK")
</pallas_src>

<mosaic_0001>
module attributes {stable_mosaic.version = 11 : i64} {
  func.func @mlp_kernel(%arg0: i32, %arg1: memref<8x32xf32, #tpu.memory_space<vmem>>, %arg2: memref<32x64xbf16, #tpu.memory_space<vmem>>, %arg3: memref<1x64xf32, #tpu.memory_space<vmem>>, %arg4: memref<64x48xbf16, #tpu.memory_space<vmem>>, %arg5: memref<1x48xf32, #tpu.memory_space<vmem>>, %arg6: memref<48x32xbf16, #tpu.memory_space<vmem>>, %arg7: memref<1x32xf32, #tpu.memory_space<vmem>>, %arg8: memref<32x128xbf16, #tpu.memory_space<vmem>>, %arg9: memref<1x128xf32, #tpu.memory_space<vmem>>, %arg10: memref<8x128xf32, #tpu.memory_space<vmem>>) attributes {dimension_semantics = [#tpu.dimension_semantics<parallel>], iteration_bounds = array<i64: 1>, scalar_prefetch = 0 : i64, scratch_operands = 0 : i64, tpu.core_type = #tpu.core_type<tc>, window_params = [{transform_indices = @transform_0, window_bounds = array<i64: 8, 32>}, {pipeline_mode = #tpu.pipeline_mode<synchronous>, transform_indices = @transform_1, window_bounds = array<i64: 32, 64>}, {pipeline_mode = #tpu.pipeline_mode<synchronous>, transform_indices = @transform_2, window_bounds = array<i64: 1, 64>}, {pipeline_mode = #tpu.pipeline_mode<synchronous>, transform_indices = @transform_3, window_bounds = array<i64: 64, 48>}, {pipeline_mode = #tpu.pipeline_mode<synchronous>, transform_indices = @transform_4, window_bounds = array<i64: 1, 48>}, {pipeline_mode = #tpu.pipeline_mode<synchronous>, transform_indices = @transform_5, window_bounds = array<i64: 48, 32>}, {pipeline_mode = #tpu.pipeline_mode<synchronous>, transform_indices = @transform_6, window_bounds = array<i64: 1, 32>}, {pipeline_mode = #tpu.pipeline_mode<synchronous>, transform_indices = @transform_7, window_bounds = array<i64: 32, 128>}, {pipeline_mode = #tpu.pipeline_mode<synchronous>, transform_indices = @transform_8, window_bounds = array<i64: 1, 128>}, {transform_indices = @transform_9, window_bounds = array<i64: 8, 128>}]} {
    %c0 = arith.constant 0 : index
    %c0_0 = arith.constant 0 : index
    %0 = vector.load %arg1[%c0, %c0_0] : memref<8x32xf32, #tpu.memory_space<vmem>>, vector<8x32xf32>
    %cst = arith.constant -1.000000e+00 : f32
    %1 = vector.broadcast %cst : f32 to vector<8x32xf32>
    %2 = arith.cmpf oeq, %0, %1 : vector<8x32xf32>
    %cst_1 = arith.constant 0.000000e+00 : f32
    %3 = vector.broadcast %cst_1 : f32 to vector<8x32xf32>
    %4 = arith.select %2, %3, %0 : vector<8x32xi1>, vector<8x32xf32>
    %5 = arith.truncf %4 : vector<8x32xf32> to vector<8x32xbf16>
    %c0_2 = arith.constant 0 : index
    %c0_3 = arith.constant 0 : index
    %6 = vector.load %arg2[%c0_2, %c0_3] : memref<32x64xbf16, #tpu.memory_space<vmem>>, vector<32x64xbf16>
    %cst_4 = arith.constant dense<0.000000e+00> : vector<8x64xf32>
    %7 = tpu.matmul %5, %6, %cst_4 {dimension_numbers = #tpu.dot_dimension_numbers<[1], [0], [0], [1], [0, 0, 1, 1], [], []>} : vector<8x32xbf16>, vector<32x64xbf16>, vector<8x64xf32> -> vector<8x64xf32>
    %c0_5 = arith.constant 0 : index
    %c0_6 = arith.constant 0 : index
    %8 = vector.load %arg3[%c0_5, %c0_6] : memref<1x64xf32, #tpu.memory_space<vmem>>, vector<1x64xf32>
    %9 = vector.broadcast %8 : vector<1x64xf32> to vector<8x64xf32>
    %10 = arith.addf %7, %9 : vector<8x64xf32>
    %cst_7 = arith.constant 0.000000e+00 : f32
    %11 = vector.broadcast %cst_7 : f32 to vector<8x64xf32>
    %12 = arith.maximumf %10, %11 : vector<8x64xf32>
    %13 = arith.truncf %12 : vector<8x64xf32> to vector<8x64xbf16>
    %c0_8 = arith.constant 0 : index
    %c0_9 = arith.constant 0 : index
    %14 = vector.load %arg4[%c0_8, %c0_9] : memref<64x48xbf16, #tpu.memory_space<vmem>>, vector<64x48xbf16>
    %cst_10 = arith.constant dense<0.000000e+00> : vector<8x48xf32>
    %15 = tpu.matmul %13, %14, %cst_10 {dimension_numbers = #tpu.dot_dimension_numbers<[1], [0], [0], [1], [0, 0, 1, 1], [], []>} : vector<8x64xbf16>, vector<64x48xbf16>, vector<8x48xf32> -> vector<8x48xf32>
    %c0_11 = arith.constant 0 : index
    %c0_12 = arith.constant 0 : index
    %16 = vector.load %arg5[%c0_11, %c0_12] : memref<1x48xf32, #tpu.memory_space<vmem>>, vector<1x48xf32>
    %17 = vector.broadcast %16 : vector<1x48xf32> to vector<8x48xf32>
    %18 = arith.addf %15, %17 : vector<8x48xf32>
    %cst_13 = arith.constant 0.000000e+00 : f32
    %19 = vector.broadcast %cst_13 : f32 to vector<8x48xf32>
    %20 = arith.maximumf %18, %19 : vector<8x48xf32>
    %21 = arith.truncf %20 : vector<8x48xf32> to vector<8x48xbf16>
    %c0_14 = arith.constant 0 : index
    %c0_15 = arith.constant 0 : index
    %22 = vector.load %arg6[%c0_14, %c0_15] : memref<48x32xbf16, #tpu.memory_space<vmem>>, vector<48x32xbf16>
    %cst_16 = arith.constant dense<0.000000e+00> : vector<8x32xf32>
    %23 = tpu.matmul %21, %22, %cst_16 {dimension_numbers = #tpu.dot_dimension_numbers<[1], [0], [0], [1], [0, 0, 1, 1], [], []>} : vector<8x48xbf16>, vector<48x32xbf16>, vector<8x32xf32> -> vector<8x32xf32>
    %c0_17 = arith.constant 0 : index
    %c0_18 = arith.constant 0 : index
    %24 = vector.load %arg7[%c0_17, %c0_18] : memref<1x32xf32, #tpu.memory_space<vmem>>, vector<1x32xf32>
    %25 = vector.broadcast %24 : vector<1x32xf32> to vector<8x32xf32>
    %26 = arith.addf %23, %25 : vector<8x32xf32>
    %27 = arith.truncf %26 : vector<8x32xf32> to vector<8x32xbf16>
    %c0_19 = arith.constant 0 : index
    %c0_20 = arith.constant 0 : index
    %28 = vector.load %arg8[%c0_19, %c0_20] : memref<32x128xbf16, #tpu.memory_space<vmem>>, vector<32x128xbf16>
    %cst_21 = arith.constant dense<0.000000e+00> : vector<8x128xf32>
    %29 = tpu.matmul %27, %28, %cst_21 {dimension_numbers = #tpu.dot_dimension_numbers<[1], [0], [0], [1], [0, 0, 1, 1], [], []>} : vector<8x32xbf16>, vector<32x128xbf16>, vector<8x128xf32> -> vector<8x128xf32>
    %c0_22 = arith.constant 0 : index
    %c0_23 = arith.constant 0 : index
    %30 = vector.load %arg9[%c0_22, %c0_23] : memref<1x128xf32, #tpu.memory_space<vmem>>, vector<1x128xf32>
    %31 = vector.broadcast %30 : vector<1x128xf32> to vector<8x128xf32>
    %32 = arith.addf %29, %31 : vector<8x128xf32>
    %c0_24 = arith.constant 0 : index
    %c0_25 = arith.constant 0 : index
    %33 = vector.load %arg10[%c0_24, %c0_25] : memref<8x128xf32, #tpu.memory_space<vmem>>, vector<8x128xf32>
    tpu.vector_store %arg10[%c0_24, %c0_25], %32 {strides = array<i32>} : memref<8x128xf32, #tpu.memory_space<vmem>>, vector<8x128xf32>,
    return
  }
  func.func @transform_0(%arg0: i32) -> (i32, i32) {
    %c0_i32 = arith.constant 0 : i32
    %c0_i32_0 = arith.constant 0 : i32
    return %arg0, %c0_i32 : i32, i32
  }
  func.func @transform_1(%arg0: i32) -> (i32, i32) {
    %c0_i32 = arith.constant 0 : i32
    %c0_i32_0 = arith.constant 0 : i32
    %c0_i32_1 = arith.constant 0 : i32
    return %c0_i32, %c0_i32_0 : i32, i32
  }
  func.func @transform_2(%arg0: i32) -> (i32, i32) {
    %c0_i32 = arith.constant 0 : i32
    %c0_i32_0 = arith.constant 0 : i32
    %c0_i32_1 = arith.constant 0 : i32
    return %c0_i32, %c0_i32_0 : i32, i32
  }
  func.func @transform_3(%arg0: i32) -> (i32, i32) {
    %c0_i32 = arith.constant 0 : i32
    %c0_i32_0 = arith.constant 0 : i32
    %c0_i32_1 = arith.constant 0 : i32
    return %c0_i32, %c0_i32_0 : i32, i32
  }
  func.func @transform_4(%arg0: i32) -> (i32, i32) {
    %c0_i32 = arith.constant 0 : i32
    %c0_i32_0 = arith.constant 0 : i32
    %c0_i32_1 = arith.constant 0 : i32
    return %c0_i32, %c0_i32_0 : i32, i32
  }
  func.func @transform_5(%arg0: i32) -> (i32, i32) {
    %c0_i32 = arith.constant 0 : i32
    %c0_i32_0 = arith.constant 0 : i32
    %c0_i32_1 = arith.constant 0 : i32
    return %c0_i32, %c0_i32_0 : i32, i32
  }
  func.func @transform_6(%arg0: i32) -> (i32, i32) {
    %c0_i32 = arith.constant 0 : i32
    %c0_i32_0 = arith.constant 0 : i32
    %c0_i32_1 = arith.constant 0 : i32
    return %c0_i32, %c0_i32_0 : i32, i32
  }
  func.func @transform_7(%arg0: i32) -> (i32, i32) {
    %c0_i32 = arith.constant 0 : i32
    %c0_i32_0 = arith.constant 0 : i32
    %c0_i32_1 = arith.constant 0 : i32
    return %c0_i32, %c0_i32_0 : i32, i32
  }
  func.func @transform_8(%arg0: i32) -> (i32, i32) {
    %c0_i32 = arith.constant 0 : i32
    %c0_i32_0 = arith.constant 0 : i32
    %c0_i32_1 = arith.constant 0 : i32
    return %c0_i32, %c0_i32_0 : i32, i32
  }
  func.func @transform_9(%arg0: i32) -> (i32, i32) {
    %c0_i32 = arith.constant 0 : i32
    %c0_i32_0 = arith.constant 0 : i32
    return %arg0, %c0_i32 : i32, i32
  }
}

</mosaic_0001>

<llo_original>
// kernel: tpu_custom_call.1
$region0: #{tpu_custom_call.1}
  #allocation0 [shape = 'u32[]', space=smem, size = 0x4, offset = 0x4, fixed_abs, tag = 'smem constant byte address 0x4 - core index']
  #allocation1 [shape = 'u32[144,128]{1,0:T(1,128)}', space=vmem, size = 0x12000, scoped, tag = 'internal scratch']
  %s0 = inlined_call_operand.vmem [shape: f32[8,32], index: 0, kind: input, shape index: {}]
  %s1 = inlined_call_operand.vmem [shape: bf16[32,64], index: 1, kind: input, shape index: {}]
  %s2 = inlined_call_operand.vmem [shape: f32[1,64], index: 2, kind: input, shape index: {}]
  %s3 = inlined_call_operand.vmem [shape: bf16[64,48], index: 3, kind: input, shape index: {}]
  %s4 = inlined_call_operand.vmem [shape: f32[1,48], index: 4, kind: input, shape index: {}]
  %s5 = inlined_call_operand.vmem [shape: bf16[48,32], index: 5, kind: input, shape index: {}]
  %s6 = inlined_call_operand.vmem [shape: f32[1,32], index: 6, kind: input, shape index: {}]
  %s7 = inlined_call_operand.vmem [shape: bf16[32,128], index: 7, kind: input, shape index: {}]
  %s8 = inlined_call_operand.vmem [shape: f32[1,128], index: 8, kind: input, shape index: {}]
  %s9 = inlined_call_operand.hbm [shape: f32[8,128], index: 9, kind: output, shape index: {}]
  %s10 = sld [smem:[#allocation0]]
  $region46: #{tpu_custom_call.1} parent=0
    _
  %s12 = ssub.s32 1, %s10
  %s13 = scalar_select 0, %s12, %s10
  $region1: #{tpu_custom_call.1} parent=0
    #allocation2 [shape = 'u8[4096]{0}', space=vmem, size = 0x1000, scoped, tag = 'output window, operand 0, single buffered']
    #allocation3 [shape = 's32[1]{0}', space=sflag, size = 0x4, scoped, tag = 'scoped memory for tpu_custom_call.1']
    %14 = vsyncpa [#allocation3], 0
    // Predicated region
    $region2: #{tpu_custom_call.1} parent=1 // pred_check
      _
    $region3: #{tpu_custom_call.1} parent=1 // pred_check_branch
      %16 = sbr.rel (0) target = $region5
    $region4: #{tpu_custom_call.1} parent=1 // pred_region
      _
    $region5: #{tpu_custom_call.1} parent=1 // pred_fallthru
      _
    // Predicated region
    $region6: #{tpu_custom_call.1} parent=1 // pred_check
      _
    $region7: #{tpu_custom_call.1} parent=1 // pred_check_branch
      %18 = sbr.rel (0) target = $region9
    $region8: #{tpu_custom_call.1} parent=1 // pred_region
      _
    $region9: #{tpu_custom_call.1} parent=1 // pred_fallthru
      _
    // Predicated region
    $region10: #{tpu_custom_call.1} parent=1 // pred_check
      _
    $region11: #{tpu_custom_call.1} parent=1 // pred_check_branch
      %20 = sbr.rel (0) target = $region13
    $region12: #{tpu_custom_call.1} parent=1 // pred_region
      _
    $region13: #{tpu_custom_call.1} parent=1 // pred_fallthru
      _
    // Predicated region
    $region14: #{tpu_custom_call.1} parent=1 // pred_check
      _
    $region15: #{tpu_custom_call.1} parent=1 // pred_check_branch
      %22 = sbr.rel (0) target = $region17
    $region16: #{tpu_custom_call.1} parent=1 // pred_region
      _
    $region17: #{tpu_custom_call.1} parent=1 // pred_fallthru
      _
    // Predicated region
    $region18: #{tpu_custom_call.1} parent=1 // pred_check
      _
    $region19: #{tpu_custom_call.1} parent=1 // pred_check_branch
      %24 = sbr.rel (0) target = $region21
    $region20: #{tpu_custom_call.1} parent=1 // pred_region
      _
    $region21: #{tpu_custom_call.1} parent=1 // pred_fallthru
      _
    // Predicated region
    $region22: #{tpu_custom_call.1} parent=1 // pred_check
      _
    $region23: #{tpu_custom_call.1} parent=1 // pred_check_branch
      %26 = sbr.rel (0) target = $region25
    $region24: #{tpu_custom_call.1} parent=1 // pred_region
      _
    $region25: #{tpu_custom_call.1} parent=1 // pred_fallthru
      _
    // Predicated region
    $region26: #{tpu_custom_call.1} parent=1 // pred_check
      _
    $region27: #{tpu_custom_call.1} parent=1 // pred_check_branch
      %28 = sbr.rel (0) target = $region29
    $region28: #{tpu_custom_call.1} parent=1 // pred_region
      _
    $region29: #{tpu_custom_call.1} parent=1 // pred_fallthru
      _
    // Predicated region
    $region30: #{tpu_custom_call.1} parent=1 // pred_check
      _
    $region31: #{tpu_custom_call.1} parent=1 // pred_check_branch
      %30 = sbr.rel (0) target = $region33
    $region32: #{tpu_custom_call.1} parent=1 // pred_region
      _
    $region33: #{tpu_custom_call.1} parent=1 // pred_fallthru
      _
    // Predicated region
    $region34: #{tpu_custom_call.1} parent=1 // pred_check
      _
    $region35: #{tpu_custom_call.1} parent=1 // pred_check_branch
      %32 = sbr.rel (0) target = $region37
    $region36: #{tpu_custom_call.1} parent=1 // pred_region
      _
    $region37: #{tpu_custom_call.1} parent=1 // pred_fallthru
      _
    %v34 = vld [vmem:[%s0] sm:$0xff]
    %vm35 = vcmp.eq.f32.partialorder %v34, -1.0
    %v36 = vsel %vm35, 0.0, %v34
    %v37 = vpack.c.bf16 %v36, %v36
    %v38 = vld [vmem:[%s1] sm:$0xf]
    %v39 = vld [vmem:[%s1 + $0x4] sm:$0xf]
    %v40 = vld [vmem:[%s1 + $0x8] sm:$0xf]
    %v41 = vld [vmem:[%s1 + $0xc] sm:$0xf]
    %v42 = vld [vmem:[%s2] sm:$0x1]
    %v44 = vlaneseq
    %v45 = vshrl.u32 %v44, 7
    %v46 = vsub.s32 0, %v45
    %v47 = vrot.slane %v42, %v46
    %v53 = vunpack.c.l.b16 %v38
    %v54 = vunpack.c.l.b16 %v39
    %v55 = vunpack.c.l.b16 %v40
    %v56 = vunpack.c.l.b16 %v41
    %v57 = vpack.c.b16 %v54, %v53
    %v58 = vpack.c.b16 %v56, %v55
    %vm61 = vcmask 261120
    %v63 = vsel %vm61, %v37, 0
    %65 = vmatprep.subr.bf16.mxu0 0
    %66 = vmatpush1.bf16.msra.mxu0 0
    %67 = vmatprep.subr.bf16.mxu0 0
    %68 = vmatpush1.bf16.msra.mxu0 0
    %69 = vmatprep.subr.bf16.mxu0 0
    %70 = vmatpush1.bf16.msra.mxu0 0
    %71 = vmatprep.subr.bf16.mxu0 0
    %72 = vmatpush1.bf16.msra.mxu0 0
    %73 = vmatprep.subr.bf16.mxu0 0
    %74 = vmatpush1.bf16.msra.mxu0 0
    %75 = vmatprep.subr.bf16.mxu0 0
    %76 = vmatpush1.bf16.msra.mxu0 0
    %77 = vmatprep.subr.bf16.mxu0 0
    %78 = vmatpush1.bf16.msra.mxu0 %v58
    %79 = vmatprep.subr.bf16.mxu0 0
    %80 = vmatpush1.bf16.msra.mxu0 %v57
    %81 = vmatprep.subr.bf16.mxu0 0
    %82 = vmatpush2.bf16.msra.mxu0 0
    %83 = vmatprep.subr.bf16.mxu0 0
    %84 = vmatpush2.bf16.msra.mxu0 0
    %85 = vmatprep.subr.bf16.mxu0 0
    %86 = vmatpush2.bf16.msra.mxu0 0
    %87 = vmatprep.subr.bf16.mxu0 0
    %88 = vmatpush2.bf16.msra.mxu0 0
    %89 = vmatprep.subr.bf16.mxu0 0
    %90 = vmatpush2.bf16.msra.mxu0 0
    %91 = vmatprep.subr.bf16.mxu0 0
    %92 = vmatpush2.bf16.msra.mxu0 0
    %93 = vmatprep.subr.bf16.mxu0 0
    %94 = vmatpush2.bf16.msra.mxu0 0
    %95 = vmatprep.subr.bf16.mxu0 0
    %96 = vmatpush2.bf16.msra.mxu0 0
    %97 = vmatprep.mubr.bf16.mxu0 0
    %98 = vmatmul.mubr.bf16.gmra.mxu0 %v63
    %v99 = vpop.f32.mrf.mxu0
    %v100 = vadd.f32 %v47, %v99
    %v101 = vpop.f32.mrf.mxu0
    %v102 = vpop.f32.mrf.mxu0
    %v103 = vpop.f32.mrf.mxu0
    %104 = vdwg.mxu0
    %v105 = vmax.f32 %v100, 0.0
    %v106 = vpack.c.bf16 %v105, %v105
    %v107 = vld [vmem:[%s3] sm:$0xf]
    %v108 = vld [vmem:[%s3 + $0x4] sm:$0xf]
    %v109 = vld [vmem:[%s3 + $0x8] sm:$0xf]
    %v110 = vld [vmem:[%s3 + $0xc] sm:$0xf]
    %v111 = vld [vmem:[%s3 + $0x10] sm:$0xf]
    %v112 = vld [vmem:[%s3 + $0x14] sm:$0xf]
    %v113 = vld [vmem:[%s3 + $0x18] sm:$0xf]
    %v114 = vld [vmem:[%s3 + $0x1c] sm:$0xf]
    %v115 = vld [vmem:[%s4] sm:$0x1]
    %v117 = vlaneseq
    %v118 = vshrl.u32 %v117, 7
    %v119 = vsub.s32 0, %v118
    %v120 = vrot.slane %v115, %v119
    %v130 = vunpack.c.l.b16 %v107
    %v131 = vunpack.c.l.b16 %v108
    %v132 = vunpack.c.l.b16 %v109
    %v133 = vunpack.c.l.b16 %v110
    %v134 = vunpack.c.l.b16 %v111
    %v135 = vunpack.c.l.b16 %v112
    %v136 = vunpack.c.l.b16 %v113
    %v137 = vunpack.c.l.b16 %v114
    %v138 = vpack.c.b16 %v131, %v130
    %v139 = vpack.c.b16 %v133, %v132
    %v140 = vpack.c.b16 %v135, %v134
    %v141 = vpack.c.b16 %v137, %v136
    %vm146 = vcmask 523264
    %v148 = vsel %vm146, %v106, 0
    %150 = vmatprep.subr.bf16.mxu0 0
    %151 = vmatpush1.bf16.msra.mxu0 0
    %152 = vmatprep.subr.bf16.mxu0 0
    %153 = vmatpush1.bf16.msra.mxu0 0
    %154 = vmatprep.subr.bf16.mxu0 0
    %155 = vmatpush1.bf16.msra.mxu0 0
    %156 = vmatprep.subr.bf16.mxu0 0
    %157 = vmatpush1.bf16.msra.mxu0 0
    %158 = vmatprep.subr.bf16.mxu0 0
    %159 = vmatpush1.bf16.msra.mxu0 %v141
    %160 = vmatprep.subr.bf16.mxu0 0
    %161 = vmatpush1.bf16.msra.mxu0 %v140
    %162 = vmatprep.subr.bf16.mxu0 0
    %163 = vmatpush1.bf16.msra.mxu0 %v139
    %164 = vmatprep.subr.bf16.mxu0 0
    %165 = vmatpush1.bf16.msra.mxu0 %v138
    %166 = vmatprep.subr.bf16.mxu0 0
    %167 = vmatpush2.bf16.msra.mxu0 0
    %168 = vmatprep.subr.bf16.mxu0 0
    %169 = vmatpush2.bf16.msra.mxu0 0
    %170 = vmatprep.subr.bf16.mxu0 0
    %171 = vmatpush2.bf16.msra.mxu0 0
    %172 = vmatprep.subr.bf16.mxu0 0
    %173 = vmatpush2.bf16.msra.mxu0 0
    %174 = vmatprep.subr.bf16.mxu0 0
    %175 = vmatpush2.bf16.msra.mxu0 0
    %176 = vmatprep.subr.bf16.mxu0 0
    %177 = vmatpush2.bf16.msra.mxu0 0
    %178 = vmatprep.subr.bf16.mxu0 0
    %179 = vmatpush2.bf16.msra.mxu0 0
    %180 = vmatprep.subr.bf16.mxu0 0
    %181 = vmatpush2.bf16.msra.mxu0 0
    %182 = vmatprep.mubr.bf16.mxu0 0
    %183 = vmatmul.mubr.bf16.gmra.mxu0 %v148
    %v184 = vpop.f32.mrf.mxu0
    %v185 = vadd.f32 %v120, %v184
    %v186 = vpop.f32.mrf.mxu0
    %v187 = vpop.f32.mrf.mxu0
    %v188 = vpop.f32.mrf.mxu0
    %189 = vdwg.mxu0
    %v190 = vmax.f32 %v185, 0.0
    %v191 = vpack.c.bf16 %v190, %v190
    %v192 = vld [vmem:[%s5] sm:$0xf]
    %v193 = vld [vmem:[%s5 + $0x4] sm:$0xf]
    %v194 = vld [vmem:[%s5 + $0x8] sm:$0xf]
    %v195 = vld [vmem:[%s5 + $0xc] sm:$0xf]
    %v196 = vld [vmem:[%s5 + $0x10] sm:$0xf]
    %v197 = vld [vmem:[%s5 + $0x14] sm:$0xf]
    %v198 = vld [vmem:[%s6] sm:$0x1]
    %v200 = vlaneseq
    %v201 = vshrl.u32 %v200, 7
    %v202 = vsub.s32 0, %v201
    %v203 = vrot.slane %v198, %v202
    %v211 = vunpack.c.l.b16 %v192
    %v212 = vunpack.c.l.b16 %v193
    %v213 = vunpack.c.l.b16 %v194
    %v214 = vunpack.c.l.b16 %v195
    %v215 = vunpack.c.l.b16 %v196
    %v216 = vunpack.c.l.b16 %v197
    %v217 = vpack.c.b16 %v212, %v211
    %v218 = vpack.c.b16 %v214, %v213
    %v219 = vpack.c.b16 %v216, %v215
    %vm223 = vcmask 392192
    %v225 = vsel %vm223, %v191, 0
    %227 = vmatprep.subr.bf16.mxu0 0
    %228 = vmatpush1.bf16.msra.mxu0 0
    %229 = vmatprep.subr.bf16.mxu0 0
    %230 = vmatpush1.bf16.msra.mxu0 0
    %231 = vmatprep.subr.bf16.mxu0 0
    %232 = vmatpush1.bf16.msra.mxu0 0
    %233 = vmatprep.subr.bf16.mxu0 0
    %234 = vmatpush1.bf16.msra.mxu0 0
    %235 = vmatprep.subr.bf16.mxu0 0
    %236 = vmatpush1.bf16.msra.mxu0 0
    %237 = vmatprep.subr.bf16.mxu0 0
    %238 = vmatpush1.bf16.msra.mxu0 %v219
    %239 = vmatprep.subr.bf16.mxu0 0
    %240 = vmatpush1.bf16.msra.mxu0 %v218
    %241 = vmatprep.subr.bf16.mxu0 0
    %242 = vmatpush1.bf16.msra.mxu0 %v217
    %243 = vmatprep.subr.bf16.mxu0 0
    %244 = vmatpush2.bf16.msra.mxu0 0
    %245 = vmatprep.subr.bf16.mxu0 0
    %246 = vmatpush2.bf16.msra.mxu0 0
    %247 = vmatprep.subr.bf16.mxu0 0
    %248 = vmatpush2.bf16.msra.mxu0 0
    %249 = vmatprep.subr.bf16.mxu0 0
    %250 = vmatpush2.bf16.msra.mxu0 0
    %251 = vmatprep.subr.bf16.mxu0 0
    %252 = vmatpush2.bf16.msra.mxu0 0
    %253 = vmatprep.subr.bf16.mxu0 0
    %254 = vmatpush2.bf16.msra.mxu0 0
    %255 = vmatprep.subr.bf16.mxu0 0
    %256 = vmatpush2.bf16.msra.mxu0 0
    %257 = vmatprep.subr.bf16.mxu0 0
    %258 = vmatpush2.bf16.msra.mxu0 0
    %259 = vmatprep.mubr.bf16.mxu0 0
    %260 = vmatmul.mubr.bf16.gmra.mxu0 %v225
    %v261 = vpop.f32.mrf.mxu0
    %v262 = vadd.f32 %v203, %v261
    %v263 = vpop.f32.mrf.mxu0
    %v264 = vpop.f32.mrf.mxu0
    %v265 = vpop.f32.mrf.mxu0
    %266 = vdwg.mxu0
    %v267 = vpack.c.bf16 %v262, %v262
    %v268 = vld [vmem:[%s7] sm:$0xf]
    %v269 = vld [vmem:[%s7 + $0x4] sm:$0xf]
    %v270 = vld [vmem:[%s7 + $0x8] sm:$0xf]
    %v271 = vld [vmem:[%s7 + $0xc] sm:$0xf]
    %v272 = vld [vmem:[%s8] sm:$0x1]
    %v274 = vlaneseq
    %v275 = vshrl.u32 %v274, 7
    %v276 = vsub.s32 0, %v275
    %v277 = vrot.slane %v272, %v276
    %v283 = vunpack.c.l.b16 %v268
    %v284 = vunpack.c.l.b16 %v269
    %v285 = vunpack.c.l.b16 %v270
    %v286 = vunpack.c.l.b16 %v271
    %v287 = vpack.c.b16 %v284, %v283
    %v288 = vpack.c.b16 %v286, %v285
    %v292 = vsel %vm61, %v267, 0
    %294 = vmatprep.subr.bf16.mxu0 0
    %295 = vmatpush1.bf16.msra.mxu0 0
    %296 = vmatprep.subr.bf16.mxu0 0
    %297 = vmatpush1.bf16.msra.mxu0 0
    %298 = vmatprep.subr.bf16.mxu0 0
    %299 = vmatpush1.bf16.msra.mxu0 0
    %300 = vmatprep.subr.bf16.mxu0 0
    %301 = vmatpush1.bf16.msra.mxu0 0
    %302 = vmatprep.subr.bf16.mxu0 0
    %303 = vmatpush1.bf16.msra.mxu0 0
    %304 = vmatprep.subr.bf16.mxu0 0
    %305 = vmatpush1.bf16.msra.mxu0 0
    %306 = vmatprep.subr.bf16.mxu0 0
    %307 = vmatpush1.bf16.msra.mxu0 %v288
    %308 = vmatprep.subr.bf16.mxu0 0
    %309 = vmatpush1.bf16.msra.mxu0 %v287
    %310 = vmatprep.subr.bf16.mxu0 0
    %311 = vmatpush2.bf16.msra.mxu0 0
    %312 = vmatprep.subr.bf16.mxu0 0
    %313 = vmatpush2.bf16.msra.mxu0 0
    %314 = vmatprep.subr.bf16.mxu0 0
    %315 = vmatpush2.bf16.msra.mxu0 0
    %316 = vmatprep.subr.bf16.mxu0 0
    %317 = vmatpush2.bf16.msra.mxu0 0
    %318 = vmatprep.subr.bf16.mxu0 0
    %319 = vmatpush2.bf16.msra.mxu0 0
    %320 = vmatprep.subr.bf16.mxu0 0
    %321 = vmatpush2.bf16.msra.mxu0 0
    %322 = vmatprep.subr.bf16.mxu0 0
    %323 = vmatpush2.bf16.msra.mxu0 0
    %324 = vmatprep.subr.bf16.mxu0 0
    %325 = vmatpush2.bf16.msra.mxu0 0
    %326 = vmatprep.mubr.bf16.mxu0 0
    %327 = vmatmul.mubr.bf16.gmra.mxu0 %v292
    %v328 = vpop.f32.mrf.mxu0
    %v329 = vadd.f32 %v277, %v328
    %v330 = vpop.f32.mrf.mxu0
    %v331 = vpop.f32.mrf.mxu0
    %v332 = vpop.f32.mrf.mxu0
    %333 = vdwg.mxu0
    %334 = vst [vmem:[#allocation2] sm:$0xff] %v329
    // Predicated region
    $region38: #{tpu_custom_call.1} parent=1 // pred_check
      _
    $region39: #{tpu_custom_call.1} parent=1 // pred_check_branch
      %336 = sbr.rel (0) target = $region41
    $region40: #{tpu_custom_call.1} parent=1 // pred_region
      %s338 = ssub.s32 128, 128
      %339 = vsyncadd [#allocation3], %s338
      %s341 = sshll.u32 [#allocation2], 4
      %s342 = int_to_ptr.vmem [resolvable:$true] %s341
      %344 = dma.vmem_to_hbm [thread:$0]  %s342, 128, %s9, [#allocation3]
    $region41: #{tpu_custom_call.1} parent=1 // pred_fallthru
      _
    // Predicated region
    $region42: #{tpu_custom_call.1} parent=1 // pred_check
      _
    $region43: #{tpu_custom_call.1} parent=1 // pred_check_branch
      %346 = sbr.rel (0) target = $region45
    $region44: #{tpu_custom_call.1} parent=1 // pred_region
      %347 = dma.done [#allocation3], 128
    $region45: #{tpu_custom_call.1} parent=1 // pred_fallthru
      _
    %348 = vsyncpa [#allocation3], 1

</llo_original>
